<compile_context>
chip_gen: v7x
topology: tpu7x:2x2x1
jax: 0.10.0
libtpu: 0.0.40
codegen_flags: <defaults>
</compile_context>

<pallas_src>
import functools

import jax
import jax.numpy as jnp
from jax.experimental import pallas as pl
from jax.experimental.pallas import tpu as pltpu

HPAD = 8  # hidden_width (5) padded to sublane width; h never touches HBM.


def _round_up(x, m):
    return ((x + m - 1) // m) * m


def armin_ann_kernel(x_ref, w1_ref, b1_ref, w2_ref, b2_ref, out_ref):
    # x: (tb, F) bf16, w1: (F, HPAD) bf16, b1: (1, HPAD) f32,
    # w2: (HPAD, C) bf16, b2: (1, C) f32, out: (tb, C) out dtype.
    h = jnp.dot(x_ref[...], w1_ref[...], preferred_element_type=jnp.float32)
    h = jnp.maximum(h + b1_ref[...], 0.0)  # use_relu=True, bias/ReLU in f32
    # n_additional_hidden_layer = 0 -> no extra hidden layers.
    y = jnp.dot(h.astype(w2_ref.dtype), w2_ref[...],
                preferred_element_type=jnp.float32) + b2_ref[...]
    out_ref[...] = y.astype(out_ref.dtype)


def prepare_params(w1, b1, w2, b2):
    """One-time glue (transpose + pad + cast), outside the call path.

    PyTorch layout in: w1 (H, F), b1 (H,), w2 (C, H), b2 (C,).
    Out: w1p (F, HPAD) bf16, b1p (1, HPAD) f32, w2p (HPAD, C) bf16, b2p (1, C) f32.
    Padding is a no-op: padded w1 cols / b1 entries are 0 and the matching w2p
    rows are 0, so padded hidden units contribute nothing to the output.
    """
    H, F = w1.shape
    C = w2.shape[0]
    w1p = (jnp.zeros((F, HPAD), jnp.bfloat16)
           .at[:, :H].set(jnp.asarray(w1, jnp.bfloat16).T))
    b1p = (jnp.zeros((1, HPAD), jnp.float32)
           .at[:, :H].set(jnp.asarray(b1, jnp.float32)))
    w2p = (jnp.zeros((HPAD, C), jnp.bfloat16)
           .at[:H, :].set(jnp.asarray(w2, jnp.bfloat16).T))
    b2p = jnp.asarray(b2, jnp.float32).reshape(1, C)
    return w1p, b1p, w2p, b2p


@functools.partial(jax.jit, static_argnames=("block_b",))
def armin_ann_forward(x, w1p, b1p, w2p, b2p, *, block_b=4096):
    """x: (B, F) (bf16 preferred); padded params from prepare_params().
    Returns (B, n_classes) in x.dtype."""
    B, F = x.shape
    C = w2p.shape[1]

    if B <= 8:
        tb = B  # block equals full batch dim (legal even if B < 8)
    else:
        # At least 2 grid steps so v7x's two TensorCores both get work; tiles
        # stay a multiple of 8 rows and at most block_b rows.
        tb = min(block_b, _round_up(pl.cdiv(B, 2), 8))
    grid = (pl.cdiv(B, tb),)  # ragged last block handled by Pallas (no jnp.pad)

    out_dtype = x.dtype
    param_bytes = (w1p.size * w1p.dtype.itemsize + b1p.size * b1p.dtype.itemsize
                   + w2p.size * w2p.dtype.itemsize + b2p.size * b2p.dtype.itemsize)
    cost = pl.CostEstimate(
        flops=2 * B * (F * HPAD + HPAD * C),
        transcendentals=0,
        bytes_accessed=(B * F * x.dtype.itemsize
                        + B * C * jnp.dtype(out_dtype).itemsize
                        + param_bytes),
    )

    return pl.pallas_call(
        armin_ann_kernel,
        out_shape=jax.ShapeDtypeStruct((B, C), out_dtype),
        grid=grid,
        in_specs=[
            pl.BlockSpec((tb, F), lambda i: (i, 0)),      # x tiles stream
            pl.BlockSpec((F, HPAD), lambda i: (0, 0)),    # weights stay resident
            pl.BlockSpec((1, HPAD), lambda i: (0, 0)),
            pl.BlockSpec((HPAD, C), lambda i: (0, 0)),
            pl.BlockSpec((1, C), lambda i: (0, 0)),
        ],
        out_specs=pl.BlockSpec((tb, C), lambda i: (i, 0)),
        compiler_params=pltpu.CompilerParams(
            dimension_semantics=("parallel",)),           # batch axis -> v7x 2 TCs
        cost_estimate=cost,
    )(x, w1p, b1p, w2p, b2p)


if __name__ == "__main__":
    # Module hyperparams from the script: hidden_width=5, n_classes=24,
    # n_additional_hidden_layer=0, use_relu=True.  Pick n_features=16, batch=8.
    n_features = 16
    hidden_width = 5
    n_classes = 24
    batch = 8

    key = jax.random.PRNGKey(0)
    k_x, k_w1, k_b1, k_w2, k_b2 = jax.random.split(key, 5)

    x = jax.random.normal(k_x, (batch, n_features), dtype=jnp.float32)

    # Deterministic parameter init mimicking nn.Linear (uniform +/- 1/sqrt(fan_in)).
    lim1 = 1.0 / jnp.sqrt(jnp.float32(n_features))
    w1 = jax.random.uniform(k_w1, (hidden_width, n_features), jnp.float32, -lim1, lim1)
    b1 = jax.random.uniform(k_b1, (hidden_width,), jnp.float32, -lim1, lim1)
    lim2 = 1.0 / jnp.sqrt(jnp.float32(hidden_width))
    w2 = jax.random.uniform(k_w2, (n_classes, hidden_width), jnp.float32, -lim2, lim2)
    b2 = jax.random.uniform(k_b2, (n_classes,), jnp.float32, -lim2, lim2)

    # One-time parameter preparation (transpose + pad + bf16 cast).
    w1p, b1p, w2p, b2p = prepare_params(w1, b1, w2, b2)

    # Data pipeline hands the kernel bf16 activations (halves the x HBM read).
    x_bf16 = x.astype(jnp.bfloat16)

    out = armin_ann_forward(x_bf16, w1p, b1p, w2p, b2p)
    out = jax.block_until_ready(out)
    out_f32 = out.astype(jnp.float32)

    assert out.shape == (batch, n_classes)
    assert out.dtype == jnp.bfloat16

    # Tight check against a bf16-input-matched reference (same rounding chain).
    xb = x_bf16.astype(jnp.float32)
    w1b = w1.astype(jnp.bfloat16).astype(jnp.float32)
    w2b = w2.astype(jnp.bfloat16).astype(jnp.float32)
    h_ref = jnp.maximum(xb @ w1b.T + b1, 0.0)
    ref_bf16_path = h_ref.astype(jnp.bfloat16).astype(jnp.float32) @ w2b.T + b2
    assert jnp.allclose(out_f32, ref_bf16_path, atol=2e-2, rtol=2e-2)

    # Looser sanity check against the pure-f32 PyTorch-equivalent math.
    ref_f32 = jnp.maximum(x @ w1.T + b1, 0.0) @ w2.T + b2
    assert jnp.allclose(out_f32, ref_f32, atol=1e-1, rtol=1e-1)

    print("KERNEL_OK")
</pallas_src>

<mosaic_0001>
module attributes {stable_mosaic.version = 11 : i64} {
  func.func @armin_ann_kernel(%arg0: i32, %arg1: memref<8x16xbf16, #tpu.memory_space<vmem>>, %arg2: memref<16x8xbf16, #tpu.memory_space<vmem>>, %arg3: memref<1x8xf32, #tpu.memory_space<vmem>>, %arg4: memref<8x24xbf16, #tpu.memory_space<vmem>>, %arg5: memref<1x24xf32, #tpu.memory_space<vmem>>, %arg6: memref<8x24xbf16, #tpu.memory_space<vmem>>) attributes {dimension_semantics = [#tpu.dimension_semantics<parallel>], iteration_bounds = array<i64: 1>, scalar_prefetch = 0 : i64, scratch_operands = 0 : i64, tpu.core_type = #tpu.core_type<tc>, window_params = [{transform_indices = @transform_0, window_bounds = array<i64: 8, 16>}, {pipeline_mode = #tpu.pipeline_mode<synchronous>, transform_indices = @transform_1, window_bounds = array<i64: 16, 8>}, {pipeline_mode = #tpu.pipeline_mode<synchronous>, transform_indices = @transform_2, window_bounds = array<i64: 1, 8>}, {pipeline_mode = #tpu.pipeline_mode<synchronous>, transform_indices = @transform_3, window_bounds = array<i64: 8, 24>}, {pipeline_mode = #tpu.pipeline_mode<synchronous>, transform_indices = @transform_4, window_bounds = array<i64: 1, 24>}, {transform_indices = @transform_5, window_bounds = array<i64: 8, 24>}]} {
    %c0 = arith.constant 0 : index
    %c0_0 = arith.constant 0 : index
    %0 = vector.load %arg1[%c0, %c0_0] : memref<8x16xbf16, #tpu.memory_space<vmem>>, vector<8x16xbf16>
    %c0_1 = arith.constant 0 : index
    %c0_2 = arith.constant 0 : index
    %1 = vector.load %arg2[%c0_1, %c0_2] : memref<16x8xbf16, #tpu.memory_space<vmem>>, vector<16x8xbf16>
    %cst = arith.constant dense<0.000000e+00> : vector<8x8xf32>
    %2 = tpu.matmul %0, %1, %cst {dimension_numbers = #tpu.dot_dimension_numbers<[1], [0], [0], [1], [0, 0, 1, 1], [], []>} : vector<8x16xbf16>, vector<16x8xbf16>, vector<8x8xf32> -> vector<8x8xf32>
    %c0_3 = arith.constant 0 : index
    %c0_4 = arith.constant 0 : index
    %3 = vector.load %arg3[%c0_3, %c0_4] : memref<1x8xf32, #tpu.memory_space<vmem>>, vector<1x8xf32>
    %4 = vector.broadcast %3 : vector<1x8xf32> to vector<8x8xf32>
    %5 = arith.addf %2, %4 : vector<8x8xf32>
    %cst_5 = arith.constant 0.000000e+00 : f32
    %6 = vector.broadcast %cst_5 : f32 to vector<8x8xf32>
    %7 = arith.maximumf %5, %6 : vector<8x8xf32>
    %8 = arith.truncf %7 : vector<8x8xf32> to vector<8x8xbf16>
    %c0_6 = arith.constant 0 : index
    %c0_7 = arith.constant 0 : index
    %9 = vector.load %arg4[%c0_6, %c0_7] : memref<8x24xbf16, #tpu.memory_space<vmem>>, vector<8x24xbf16>
    %cst_8 = arith.constant dense<0.000000e+00> : vector<8x24xf32>
    %10 = tpu.matmul %8, %9, %cst_8 {dimension_numbers = #tpu.dot_dimension_numbers<[1], [0], [0], [1], [0, 0, 1, 1], [], []>} : vector<8x8xbf16>, vector<8x24xbf16>, vector<8x24xf32> -> vector<8x24xf32>
    %c0_9 = arith.constant 0 : index
    %c0_10 = arith.constant 0 : index
    %11 = vector.load %arg5[%c0_9, %c0_10] : memref<1x24xf32, #tpu.memory_space<vmem>>, vector<1x24xf32>
    %12 = vector.broadcast %11 : vector<1x24xf32> to vector<8x24xf32>
    %13 = arith.addf %10, %12 : vector<8x24xf32>
    %14 = arith.truncf %13 : vector<8x24xf32> to vector<8x24xbf16>
    %c0_11 = arith.constant 0 : index
    %c0_12 = arith.constant 0 : index
    %15 = vector.load %arg6[%c0_11, %c0_12] : memref<8x24xbf16, #tpu.memory_space<vmem>>, vector<8x24xbf16>
    tpu.vector_store %arg6[%c0_11, %c0_12], %14 {strides = array<i32>} : memref<8x24xbf16, #tpu.memory_space<vmem>>, vector<8x24xbf16>,
    return
  }
  func.func @transform_0(%arg0: i32) -> (i32, i32) {
    %c0_i32 = arith.constant 0 : i32
    %c0_i32_0 = arith.constant 0 : i32
    return %arg0, %c0_i32 : i32, i32
  }
  func.func @transform_1(%arg0: i32) -> (i32, i32) {
    %c0_i32 = arith.constant 0 : i32
    %c0_i32_0 = arith.constant 0 : i32
    %c0_i32_1 = arith.constant 0 : i32
    return %c0_i32, %c0_i32_0 : i32, i32
  }
  func.func @transform_2(%arg0: i32) -> (i32, i32) {
    %c0_i32 = arith.constant 0 : i32
    %c0_i32_0 = arith.constant 0 : i32
    %c0_i32_1 = arith.constant 0 : i32
    return %c0_i32, %c0_i32_0 : i32, i32
  }
  func.func @transform_3(%arg0: i32) -> (i32, i32) {
    %c0_i32 = arith.constant 0 : i32
    %c0_i32_0 = arith.constant 0 : i32
    %c0_i32_1 = arith.constant 0 : i32
    return %c0_i32, %c0_i32_0 : i32, i32
  }
  func.func @transform_4(%arg0: i32) -> (i32, i32) {
    %c0_i32 = arith.constant 0 : i32
    %c0_i32_0 = arith.constant 0 : i32
    %c0_i32_1 = arith.constant 0 : i32
    return %c0_i32, %c0_i32_0 : i32, i32
  }
  func.func @transform_5(%arg0: i32) -> (i32, i32) {
    %c0_i32 = arith.constant 0 : i32
    %c0_i32_0 = arith.constant 0 : i32
    return %arg0, %c0_i32 : i32, i32
  }
}

</mosaic_0001>

<llo_original>
// kernel: armin_ann_forward.1
$region0: #{armin_ann_forward.1}
  #allocation0 [shape = 'u32[]', space=smem, size = 0x4, offset = 0x4, fixed_abs, tag = 'smem constant byte address 0x4 - core index']
  #allocation1 [shape = 'u32[144,128]{1,0:T(1,128)}', space=vmem, size = 0x12000, scoped, tag = 'internal scratch']
  %s0 = inlined_call_operand.vmem [shape: bf16[8,16], index: 0, kind: input, shape index: {}]
  %s1 = inlined_call_operand.vmem [shape: bf16[16,8], index: 1, kind: input, shape index: {}]
  %s2 = inlined_call_operand.vmem [shape: f32[1,8], index: 2, kind: input, shape index: {}]
  %s3 = inlined_call_operand.vmem [shape: bf16[8,24], index: 3, kind: input, shape index: {}]
  %s4 = inlined_call_operand.vmem [shape: f32[1,24], index: 4, kind: input, shape index: {}]
  %s5 = inlined_call_operand.hbm [shape: bf16[8,24], index: 5, kind: output, shape index: {}]
  %s6 = sld [smem:[#allocation0]]
  $region30: #{armin_ann_forward.1} parent=0
    _
  %s8 = ssub.s32 1, %s6
  %s9 = scalar_select 0, %s8, %s6
  $region1: #{armin_ann_forward.1} parent=0
    #allocation2 [shape = 'u8[2048]{0}', space=vmem, size = 0x800, scoped, tag = 'output window, operand 0, single buffered']
    #allocation3 [shape = 's32[1]{0}', space=sflag, size = 0x4, scoped, tag = 'scoped memory for armin_ann_forward.1']
    %10 = vsyncpa [#allocation3], 0
    // Predicated region
    $region2: #{armin_ann_forward.1} parent=1 // pred_check
      _
    $region3: #{armin_ann_forward.1} parent=1 // pred_check_branch
      %12 = sbr.rel (0) target = $region5
    $region4: #{armin_ann_forward.1} parent=1 // pred_region
      _
    $region5: #{armin_ann_forward.1} parent=1 // pred_fallthru
      _
    // Predicated region
    $region6: #{armin_ann_forward.1} parent=1 // pred_check
      _
    $region7: #{armin_ann_forward.1} parent=1 // pred_check_branch
      %14 = sbr.rel (0) target = $region9
    $region8: #{armin_ann_forward.1} parent=1 // pred_region
      _
    $region9: #{armin_ann_forward.1} parent=1 // pred_fallthru
      _
    // Predicated region
    $region10: #{armin_ann_forward.1} parent=1 // pred_check
      _
    $region11: #{armin_ann_forward.1} parent=1 // pred_check_branch
      %16 = sbr.rel (0) target = $region13
    $region12: #{armin_ann_forward.1} parent=1 // pred_region
      _
    $region13: #{armin_ann_forward.1} parent=1 // pred_fallthru
      _
    // Predicated region
    $region14: #{armin_ann_forward.1} parent=1 // pred_check
      _
    $region15: #{armin_ann_forward.1} parent=1 // pred_check_branch
      %18 = sbr.rel (0) target = $region17
    $region16: #{armin_ann_forward.1} parent=1 // pred_region
      _
    $region17: #{armin_ann_forward.1} parent=1 // pred_fallthru
      _
    // Predicated region
    $region18: #{armin_ann_forward.1} parent=1 // pred_check
      _
    $region19: #{armin_ann_forward.1} parent=1 // pred_check_branch
      %20 = sbr.rel (0) target = $region21
    $region20: #{armin_ann_forward.1} parent=1 // pred_region
      _
    $region21: #{armin_ann_forward.1} parent=1 // pred_fallthru
      _
    %v22 = vld [vmem:[%s0] sm:$0xf]
    %v23 = vld [vmem:[%s1] sm:$0xf]
    %v24 = vld [vmem:[%s1 + $0x4] sm:$0xf]
    %v25 = vld [vmem:[%s2] sm:$0x1]
    %v27 = vlaneseq
    %v28 = vshrl.u32 %v27, 7
    %v29 = vsub.s32 0, %v28
    %v30 = vrot.slane %v25, %v29
    %v34 = vunpack.c.l.b16 %v23
    %v35 = vunpack.c.l.b16 %v24
    %v36 = vpack.c.b16 %v35, %v34
    %vm38 = vcmask 130048
    %v40 = vsel %vm38, %v22, 0
    %42 = vmatprep.subr.bf16.mxu0 0
    %43 = vmatpush1.bf16.msra.mxu0 %v36
    %44 = vmatprep.subr.bf16.mxu0 0
    %45 = vmatpush1.bf16.msra.mxu0 0
    %46 = vmatprep.subr.bf16.mxu0 0
    %47 = vmatpush1.bf16.msra.mxu0 0
    %48 = vmatprep.subr.bf16.mxu0 0
    %49 = vmatpush1.bf16.msra.mxu0 0
    %50 = vmatprep.subr.bf16.mxu0 0
    %51 = vmatpush1.bf16.msra.mxu0 0
    %52 = vmatprep.subr.bf16.mxu0 0
    %53 = vmatpush1.bf16.msra.mxu0 0
    %54 = vmatprep.subr.bf16.mxu0 0
    %55 = vmatpush1.bf16.msra.mxu0 0
    %56 = vmatprep.subr.bf16.mxu0 0
    %57 = vmatpush1.bf16.msra.mxu0 0
    %58 = vmatprep.subr.bf16.mxu0 0
    %59 = vmatpush1.bf16.msra.mxu0 0
    %60 = vmatprep.subr.bf16.mxu0 0
    %61 = vmatpush1.bf16.msra.mxu0 0
    %62 = vmatprep.subr.bf16.mxu0 0
    %63 = vmatpush1.bf16.msra.mxu0 0
    %64 = vmatprep.subr.bf16.mxu0 0
    %65 = vmatpush1.bf16.msra.mxu0 0
    %66 = vmatprep.subr.bf16.mxu0 0
    %67 = vmatpush1.bf16.msra.mxu0 0
    %68 = vmatprep.subr.bf16.mxu0 0
    %69 = vmatpush1.bf16.msra.mxu0 0
    %70 = vmatprep.subr.bf16.mxu0 0
    %71 = vmatpush1.bf16.msra.mxu0 0
    %72 = vmatprep.subr.bf16.mxu0 0
    %73 = vmatpush1.bf16.msra.mxu0 0
    %74 = vmatprep.mubr.bf16.mxu0 0
    %75 = vmatmul.mubr.bf16.gmra.mrb[0].mxu0 %v40
    %v76 = vpop.f32.mrb[0].mxu0
    %v77 = vadd.f32 %v30, %v76
    %v78 = vpop.f32.mrb[0].mxu0
    %v79 = vpop.f32.mrb[0].mxu0
    %v80 = vpop.f32.mrb[0].mxu0
    %81 = vdwg.mxu0
    %v82 = vmax.f32 %v77, 0.0
    %v83 = vpack.c.bf16 %v82, %v82
    %v84 = vld [vmem:[%s3] sm:$0xf]
    %v85 = vld [vmem:[%s4] sm:$0x1]
    %v87 = vlaneseq
    %v88 = vshrl.u32 %v87, 7
    %v89 = vsub.s32 0, %v88
    %v90 = vrot.slane %v85, %v89
    %vm92 = vcmask 64512
    %v94 = vsel %vm92, %v83, 0
    %vm96 = vcmask 1043456
    %v98 = vsel %vm96, %v84, 0
    %100 = vmatprep.subr.bf16.mxu0 0
    %101 = vmatpush1.bf16.msra.mxu0 %v98
    %102 = vmatprep.subr.bf16.mxu0 0
    %103 = vmatpush1.bf16.msra.mxu0 0
    %104 = vmatprep.subr.bf16.mxu0 0
    %105 = vmatpush1.bf16.msra.mxu0 0
    %106 = vmatprep.subr.bf16.mxu0 0
    %107 = vmatpush1.bf16.msra.mxu0 0
    %108 = vmatprep.subr.bf16.mxu0 0
    %109 = vmatpush1.bf16.msra.mxu0 0
    %110 = vmatprep.subr.bf16.mxu0 0
    %111 = vmatpush1.bf16.msra.mxu0 0
    %112 = vmatprep.subr.bf16.mxu0 0
    %113 = vmatpush1.bf16.msra.mxu0 0
    %114 = vmatprep.subr.bf16.mxu0 0
    %115 = vmatpush1.bf16.msra.mxu0 0
    %116 = vmatprep.subr.bf16.mxu0 0
    %117 = vmatpush1.bf16.msra.mxu0 0
    %118 = vmatprep.subr.bf16.mxu0 0
    %119 = vmatpush1.bf16.msra.mxu0 0
    %120 = vmatprep.subr.bf16.mxu0 0
    %121 = vmatpush1.bf16.msra.mxu0 0
    %122 = vmatprep.subr.bf16.mxu0 0
    %123 = vmatpush1.bf16.msra.mxu0 0
    %124 = vmatprep.subr.bf16.mxu0 0
    %125 = vmatpush1.bf16.msra.mxu0 0
    %126 = vmatprep.subr.bf16.mxu0 0
    %127 = vmatpush1.bf16.msra.mxu0 0
    %128 = vmatprep.subr.bf16.mxu0 0
    %129 = vmatpush1.bf16.msra.mxu0 0
    %130 = vmatprep.subr.bf16.mxu0 0
    %131 = vmatpush1.bf16.msra.mxu0 0
    %132 = vmatprep.mubr.bf16.mxu0 0
    %133 = vmatmul.mubr.bf16.gmra.mrb[0].mxu0 %v94
    %v134 = vpop.f32.mrb[0].mxu0
    %v135 = vadd.f32 %v90, %v134
    %v136 = vpop.f32.mrb[0].mxu0
    %v137 = vpop.f32.mrb[0].mxu0
    %v138 = vpop.f32.mrb[0].mxu0
    %139 = vdwg.mxu0
    %v140 = vpack.c.bf16 %v135, %v135
    %vm141 = vcmask 191488
    %142 = vst.msk [vmem:[#allocation2] sm:$0xf] %vm141, %v140
    // Predicated region
    $region22: #{armin_ann_forward.1} parent=1 // pred_check
      _
    $region23: #{armin_ann_forward.1} parent=1 // pred_check_branch
      %144 = sbr.rel (0) target = $region25
    $region24: #{armin_ann_forward.1} parent=1 // pred_region
      %s146 = ssub.s32 64, 64
      %147 = vsyncadd [#allocation3], %s146
      %s149 = sshll.u32 [#allocation2], 4
      %s150 = int_to_ptr.vmem [resolvable:$true] %s149
      %152 = dma.vmem_to_hbm [thread:$0]  %s150, 64, %s5, [#allocation3]
    $region25: #{armin_ann_forward.1} parent=1 // pred_fallthru
      _
    // Predicated region
    $region26: #{armin_ann_forward.1} parent=1 // pred_check
      _
    $region27: #{armin_ann_forward.1} parent=1 // pred_check_branch
      %154 = sbr.rel (0) target = $region29
    $region28: #{armin_ann_forward.1} parent=1 // pred_region
      %155 = dma.done [#allocation3], 64
    $region29: #{armin_ann_forward.1} parent=1 // pred_fallthru
      _
    %156 = vsyncpa [#allocation3], 1

</llo_original>
